<compile_context>
chip_gen: v7x
topology: tpu7x:2x2x1
jax: 0.10.0
libtpu: 0.0.40
codegen_flags: <defaults>
</compile_context>

<pallas_src>
import math

import jax
import jax.numpy as jnp
from jax.experimental import pallas as pl
from jax.experimental.pallas import tpu as pltpu


def _make_divisible(v, divisor=8, min_value=None):
    if min_value is None:
        min_value = divisor
    new_v = max(min_value, int(v + divisor / 2) // divisor * divisor)
    if new_v < 0.9 * v:
        new_v += divisor
    return new_v


def _round_up(x, m):
    return (x + m - 1) // m * m


def _hardsigmoid(x):
    return jnp.clip(x * (1.0 / 6.0) + 0.5, 0.0, 1.0)


# ----------------------------- Pallas kernels --------------------------------

def _make_fused_kernel(inv_hw):
    """Per-batch fused SE: pool -> fc1 -> ReLU -> fc2 -> hardsigmoid -> scale."""
    def kernel(x_ref, w1t_ref, b1_ref, w2t_ref, b2_ref, o_ref):
        x = x_ref[0]                                                  # [C, HW]
        xf = x.astype(jnp.float32)
        pooled = jnp.sum(xf, axis=-1, keepdims=True) * inv_hw         # [C, 1]
        s = jnp.dot(w1t_ref[...], pooled, preferred_element_type=jnp.float32)
        s = jnp.maximum(s + b1_ref[...], 0.0)                         # [Cs, 1]
        s = jnp.dot(w2t_ref[...], s, preferred_element_type=jnp.float32)
        scale = _hardsigmoid(s + b2_ref[...])                         # [C, 1]
        o_ref[0] = (xf * scale).astype(o_ref.dtype)                   # bcast lanes
    return kernel


def _make_pool_fc_kernel(inv_hw):
    """Accumulate per-channel sums over HW tiles; on the last tile run
    fc1 -> ReLU -> fc2 -> hardsigmoid in place, writing the scale column."""
    def kernel(x_ref, w1t_ref, b1_ref, w2t_ref, b2_ref, o_ref):
        t = pl.program_id(1)

        @pl.when(t == 0)
        def _():
            o_ref[...] = jnp.zeros_like(o_ref)

        x = x_ref[0].astype(jnp.float32)                              # [C, T_HW]
        o_ref[0] += jnp.sum(x, axis=-1, keepdims=True)                # [C, 1]

        @pl.when(t == pl.num_programs(1) - 1)
        def _():
            pooled = o_ref[0] * inv_hw                                # [C, 1]
            s = jnp.dot(w1t_ref[...], pooled, preferred_element_type=jnp.float32)
            s = jnp.maximum(s + b1_ref[...], 0.0)
            s = jnp.dot(w2t_ref[...], s, preferred_element_type=jnp.float32)
            o_ref[0] = _hardsigmoid(s + b2_ref[...])                  # [C, 1]
    return kernel


def _scale_kernel(x_ref, s_ref, o_ref):
    x = x_ref[0].astype(jnp.float32)                                  # [C, T_HW]
    o_ref[0] = (x * s_ref[0]).astype(o_ref.dtype)                     # [C,1] bcast


# ----------------------------- wrapper ----------------------------------------

def _choose_hw_tile(hw, c, itemsize, target_bytes=4 << 20):
    """HW tile (multiple of 128 lanes) sized by bytes: ~4 MiB per block so the
    double-buffered in+out footprint of the scale pass is ~16 MiB (fits the
    32 MiB scoped-VMEM limit on v5e/v6e/v7x) and sits near the HBM roofline."""
    lanes = (target_bytes // max(1, c * itemsize)) // 128 * 128
    lanes = max(128, lanes)
    return min(lanes, _round_up(hw, 128))


def squeeze_excitation(x_nchw, w1, b1, w2, b2, *, fused_slab_bytes=6 << 20):
    """SqueezeExcitation forward.  x: [B,C,H,W]; w1: [C,Cs]; w2: [Cs,C]."""
    B, C, H, W = x_nchw.shape
    Cs = w1.shape[1]
    HW = H * W
    dtype = x_nchw.dtype
    itemsize = jnp.dtype(dtype).itemsize

    x = x_nchw.reshape(B, C, HW)                    # free view, NCHW-native

    # Pre-transposed weights / column biases: everything in-kernel stays in
    # [channel, 1]-column orientation (broadcasts over the HW lane axis).
    w1t = jnp.transpose(w1).astype(jnp.float32)     # [Cs, C]
    b1c = b1.astype(jnp.float32).reshape(Cs, 1)
    w2t = jnp.transpose(w2).astype(jnp.float32)     # [C, Cs]
    b2c = b2.astype(jnp.float32).reshape(C, 1)

    inv_hw = 1.0 / HW
    slab_bytes = C * HW * itemsize

    # ---- fused fast path: per-batch slab resident in VMEM --------------------
    if slab_bytes <= fused_slab_bytes:
        y = pl.pallas_call(
            _make_fused_kernel(inv_hw),
            out_shape=jax.ShapeDtypeStruct((B, C, HW), dtype),
            grid=(B,),
            in_specs=[
                pl.BlockSpec((1, C, HW), lambda b: (b, 0, 0)),
                pl.BlockSpec((Cs, C), lambda b: (0, 0)),
                pl.BlockSpec((Cs, 1), lambda b: (0, 0)),
                pl.BlockSpec((C, Cs), lambda b: (0, 0)),
                pl.BlockSpec((C, 1), lambda b: (0, 0)),
            ],
            out_specs=pl.BlockSpec((1, C, HW), lambda b: (b, 0, 0)),
            compiler_params=pltpu.CompilerParams(
                dimension_semantics=("parallel",),
                vmem_limit_bytes=32 * 1024 * 1024),
            cost_estimate=pl.CostEstimate(
                flops=2 * B * C * HW + 4 * B * C * Cs,
                transcendentals=0,
                bytes_accessed=2 * B * slab_bytes),
        )(x, w1t, b1c, w2t, b2c)
        return y.reshape(B, C, H, W)

    # ---- tiled fallback for slabs too big for VMEM ----------------------------
    T_HW = _choose_hw_tile(HW, C, itemsize)
    HW_pad = _round_up(HW, T_HW)
    n_t = HW_pad // T_HW
    xp = x if HW_pad == HW else jnp.pad(x, ((0, 0), (0, 0), (0, HW_pad - HW)))
    bytes_x = B * C * HW_pad * itemsize

    # pass 1: HW-tiled sum-pool with the FC folded into the last tile.
    scale = pl.pallas_call(
        _make_pool_fc_kernel(inv_hw),
        out_shape=jax.ShapeDtypeStruct((B, C, 1), jnp.float32),
        grid=(B, n_t),
        in_specs=[
            pl.BlockSpec((1, C, T_HW), lambda b, t: (b, 0, t)),
            pl.BlockSpec((Cs, C), lambda b, t: (0, 0)),
            pl.BlockSpec((Cs, 1), lambda b, t: (0, 0)),
            pl.BlockSpec((C, Cs), lambda b, t: (0, 0)),
            pl.BlockSpec((C, 1), lambda b, t: (0, 0)),
        ],
        out_specs=pl.BlockSpec((1, C, 1), lambda b, t: (b, 0, 0)),
        compiler_params=pltpu.CompilerParams(
            dimension_semantics=("parallel", "arbitrary"),
            vmem_limit_bytes=32 * 1024 * 1024),
        cost_estimate=pl.CostEstimate(
            flops=B * C * HW_pad + 4 * B * C * Cs,
            transcendentals=0,
            bytes_accessed=bytes_x + B * C * 4),
    )(xp, w1t, b1c, w2t, b2c)

    # pass 2: x * scale broadcast (HBM-bandwidth bound, fully parallel).
    y = pl.pallas_call(
        _scale_kernel,
        out_shape=jax.ShapeDtypeStruct((B, C, HW_pad), dtype),
        grid=(B, n_t),
        in_specs=[
            pl.BlockSpec((1, C, T_HW), lambda b, t: (b, 0, t)),
            pl.BlockSpec((1, C, 1), lambda b, t: (b, 0, 0)),
        ],
        out_specs=pl.BlockSpec((1, C, T_HW), lambda b, t: (b, 0, t)),
        compiler_params=pltpu.CompilerParams(
            dimension_semantics=("parallel", "parallel"),
            vmem_limit_bytes=32 * 1024 * 1024),
        cost_estimate=pl.CostEstimate(
            flops=B * C * HW_pad, transcendentals=0,
            bytes_accessed=2 * bytes_x + B * C * 4),
    )(xp, scale)

    if HW_pad != HW:
        y = y[:, :, :HW]
    return y.reshape(B, C, H, W)


# ----------------------------- reference & main --------------------------------

def _se_reference(x, w1, b1, w2, b2):
    pooled = jnp.mean(x.astype(jnp.float32), axis=(2, 3))            # [B, C]
    s = jnp.maximum(pooled @ w1 + b1, 0.0)
    s = s @ w2 + b2
    s = jnp.clip(s / 6.0 + 0.5, 0.0, 1.0)                            # hardsigmoid
    return x * s[:, :, None, None]


if __name__ == "__main__":
    key = jax.random.PRNGKey(0)
    k_x, k_w1, k_b1, k_w2, k_b2 = jax.random.split(key, 5)

    # Small shapes consistent with the module: SE over a [B, C, H, W] feature map.
    B, C, H, W = 2, 32, 16, 16
    Cs = _make_divisible(C // 4, 8)          # squeeze_factor = 4 (torchvision)

    x = jax.random.normal(k_x, (B, C, H, W), jnp.float32)
    # fc1 / fc2 are 1x1 Conv2d layers; stored directly as matmul matrices here.
    w1 = jax.random.normal(k_w1, (C, Cs), jnp.float32) * (1.0 / math.sqrt(C))
    b1 = jax.random.normal(k_b1, (Cs,), jnp.float32) * 0.1
    w2 = jax.random.normal(k_w2, (Cs, C), jnp.float32) * (1.0 / math.sqrt(Cs))
    b2 = jax.random.normal(k_b2, (C,), jnp.float32) * 0.1

    ref = _se_reference(x, w1, b1, w2, b2)

    # Fused single-kernel path (default for these shapes).
    out_fused = squeeze_excitation(x, w1, b1, w2, b2)
    jax.block_until_ready(out_fused)
    err_f = float(jnp.max(jnp.abs(out_fused - ref)))
    if out_fused.shape != ref.shape or err_f > 1e-3:
        raise AssertionError(f"fused mismatch: shape={out_fused.shape}, max_abs_err={err_f}")

    # Also exercise the tiled fallback path (forced).
    out_tiled = squeeze_excitation(x, w1, b1, w2, b2, fused_slab_bytes=0)
    jax.block_until_ready(out_tiled)
    err_t = float(jnp.max(jnp.abs(out_tiled - ref)))
    if out_tiled.shape != ref.shape or err_t > 1e-3:
        raise AssertionError(f"tiled mismatch: shape={out_tiled.shape}, max_abs_err={err_t}")

    print("KERNEL_OK")
</pallas_src>

<mosaic_0001>
module attributes {stable_mosaic.version = 11 : i64} {
  func.func @kernel(%arg0: i32, %arg1: memref<1x32x256xf32, #tpu.memory_space<vmem>>, %arg2: memref<8x32xf32, #tpu.memory_space<vmem>>, %arg3: memref<8x1xf32, #tpu.memory_space<vmem>>, %arg4: memref<32x8xf32, #tpu.memory_space<vmem>>, %arg5: memref<32x1xf32, #tpu.memory_space<vmem>>, %arg6: memref<1x32x256xf32, #tpu.memory_space<vmem>>) attributes {dimension_semantics = [#tpu.dimension_semantics<parallel>], iteration_bounds = array<i64: 2>, scalar_prefetch = 0 : i64, scratch_operands = 0 : i64, tpu.core_type = #tpu.core_type<tc>, window_params = [{transform_indices = @transform_0, window_bounds = array<i64: 1, 32, 256>}, {pipeline_mode = #tpu.pipeline_mode<synchronous>, transform_indices = @transform_1, window_bounds = array<i64: 8, 32>}, {pipeline_mode = #tpu.pipeline_mode<synchronous>, transform_indices = @transform_2, window_bounds = array<i64: 8, 1>}, {pipeline_mode = #tpu.pipeline_mode<synchronous>, transform_indices = @transform_3, window_bounds = array<i64: 32, 8>}, {pipeline_mode = #tpu.pipeline_mode<synchronous>, transform_indices = @transform_4, window_bounds = array<i64: 32, 1>}, {transform_indices = @transform_5, window_bounds = array<i64: 1, 32, 256>}]} {
    %c0 = arith.constant 0 : index
    %c0_0 = arith.constant 0 : index
    %c0_1 = arith.constant 0 : index
    %0 = vector.load %arg1[%c0, %c0_0, %c0_1] : memref<1x32x256xf32, #tpu.memory_space<vmem>>, vector<1x32x256xf32>
    %1 = vector.shape_cast %0 : vector<1x32x256xf32> to vector<32x256xf32>
    %cst = arith.constant dense<0.000000e+00> : vector<32xf32>
    %2 = vector.multi_reduction <add>, %1, %cst [1] : vector<32x256xf32> to vector<32xf32>
    %3 = vector.shape_cast %2 : vector<32xf32> to vector<32x1xf32>
    %cst_2 = arith.constant 3.906250e-03 : f32
    %4 = vector.broadcast %cst_2 : f32 to vector<32x1xf32>
    %5 = arith.mulf %3, %4 : vector<32x1xf32>
    %c0_3 = arith.constant 0 : index
    %c0_4 = arith.constant 0 : index
    %6 = vector.load %arg2[%c0_3, %c0_4] : memref<8x32xf32, #tpu.memory_space<vmem>>, vector<8x32xf32>
    %cst_5 = arith.constant dense<0.000000e+00> : vector<8x1xf32>
    %7 = tpu.matmul %6, %5, %cst_5 {dimension_numbers = #tpu.dot_dimension_numbers<[1], [0], [0], [1], [0, 0, 1, 1], [], []>} : vector<8x32xf32>, vector<32x1xf32>, vector<8x1xf32> -> vector<8x1xf32>
    %c0_6 = arith.constant 0 : index
    %c0_7 = arith.constant 0 : index
    %8 = vector.load %arg3[%c0_6, %c0_7] : memref<8x1xf32, #tpu.memory_space<vmem>>, vector<8x1xf32>
    %9 = arith.addf %7, %8 : vector<8x1xf32>
    %cst_8 = arith.constant 0.000000e+00 : f32
    %10 = vector.broadcast %cst_8 : f32 to vector<8x1xf32>
    %11 = arith.maximumf %9, %10 : vector<8x1xf32>
    %c0_9 = arith.constant 0 : index
    %c0_10 = arith.constant 0 : index
    %12 = vector.load %arg4[%c0_9, %c0_10] : memref<32x8xf32, #tpu.memory_space<vmem>>, vector<32x8xf32>
    %cst_11 = arith.constant dense<0.000000e+00> : vector<32x1xf32>
    %13 = tpu.matmul %12, %11, %cst_11 {dimension_numbers = #tpu.dot_dimension_numbers<[1], [0], [0], [1], [0, 0, 1, 1], [], []>} : vector<32x8xf32>, vector<8x1xf32>, vector<32x1xf32> -> vector<32x1xf32>
    %c0_12 = arith.constant 0 : index
    %c0_13 = arith.constant 0 : index
    %14 = vector.load %arg5[%c0_12, %c0_13] : memref<32x1xf32, #tpu.memory_space<vmem>>, vector<32x1xf32>
    %15 = arith.addf %13, %14 : vector<32x1xf32>
    %cst_14 = arith.constant 0.166666672 : f32
    %16 = vector.broadcast %cst_14 : f32 to vector<32x1xf32>
    %17 = arith.mulf %15, %16 : vector<32x1xf32>
    %cst_15 = arith.constant 5.000000e-01 : f32
    %18 = vector.broadcast %cst_15 : f32 to vector<32x1xf32>
    %19 = arith.addf %17, %18 : vector<32x1xf32>
    %cst_16 = arith.constant 0.000000e+00 : f32
    %cst_17 = arith.constant 1.000000e+00 : f32
    %20 = vector.broadcast %cst_16 : f32 to vector<32x1xf32>
    %21 = arith.maximumf %20, %19 : vector<32x1xf32>
    %22 = vector.broadcast %cst_17 : f32 to vector<32x1xf32>
    %23 = arith.minimumf %22, %21 : vector<32x1xf32>
    %24 = vector.broadcast %23 : vector<32x1xf32> to vector<32x256xf32>
    %25 = arith.mulf %1, %24 : vector<32x256xf32>
    %c0_18 = arith.constant 0 : index
    %c0_19 = arith.constant 0 : index
    %c0_20 = arith.constant 0 : index
    %26 = vector.load %arg6[%c0_18, %c0_19, %c0_20] : memref<1x32x256xf32, #tpu.memory_space<vmem>>, vector<1x32x256xf32>
    %27 = vector.shape_cast %26 : vector<1x32x256xf32> to vector<32x256xf32>
    %28 = vector.shape_cast %25 : vector<32x256xf32> to vector<1x32x256xf32>
    tpu.vector_store %arg6[%c0_18, %c0_19, %c0_20], %28 {strides = array<i32>} : memref<1x32x256xf32, #tpu.memory_space<vmem>>, vector<1x32x256xf32>,
    return
  }
  func.func @transform_0(%arg0: i32) -> (i32, i32, i32) {
    %c0_i32 = arith.constant 0 : i32
    %c0_i32_0 = arith.constant 0 : i32
    %c0_i32_1 = arith.constant 0 : i32
    return %arg0, %c0_i32, %c0_i32_0 : i32, i32, i32
  }
  func.func @transform_1(%arg0: i32) -> (i32, i32) {
    %c0_i32 = arith.constant 0 : i32
    %c0_i32_0 = arith.constant 0 : i32
    %c0_i32_1 = arith.constant 0 : i32
    return %c0_i32, %c0_i32_0 : i32, i32
  }
  func.func @transform_2(%arg0: i32) -> (i32, i32) {
    %c0_i32 = arith.constant 0 : i32
    %c0_i32_0 = arith.constant 0 : i32
    %c0_i32_1 = arith.constant 0 : i32
    return %c0_i32, %c0_i32_0 : i32, i32
  }
  func.func @transform_3(%arg0: i32) -> (i32, i32) {
    %c0_i32 = arith.constant 0 : i32
    %c0_i32_0 = arith.constant 0 : i32
    %c0_i32_1 = arith.constant 0 : i32
    return %c0_i32, %c0_i32_0 : i32, i32
  }
  func.func @transform_4(%arg0: i32) -> (i32, i32) {
    %c0_i32 = arith.constant 0 : i32
    %c0_i32_0 = arith.constant 0 : i32
    %c0_i32_1 = arith.constant 0 : i32
    return %c0_i32, %c0_i32_0 : i32, i32
  }
  func.func @transform_5(%arg0: i32) -> (i32, i32, i32) {
    %c0_i32 = arith.constant 0 : i32
    %c0_i32_0 = arith.constant 0 : i32
    %c0_i32_1 = arith.constant 0 : i32
    return %arg0, %c0_i32, %c0_i32_0 : i32, i32, i32
  }
}

</mosaic_0001>

<llo_original>
// kernel: tpu_custom_call.1
$region0: #{tpu_custom_call.1}
  #allocation0 [shape = 'u32[]', space=smem, size = 0x4, offset = 0x4, fixed_abs, tag = 'smem constant byte address 0x4 - core index']
  #allocation1 [shape = 'u32[144,128]{1,0:T(1,128)}', space=vmem, size = 0x12000, scoped, tag = 'internal scratch']
  %s0 = inlined_call_operand.hbm [shape: f32[2,32,256], index: 0, kind: input, shape index: {}]
  %s1 = inlined_call_operand.vmem [shape: f32[8,32], index: 1, kind: input, shape index: {}]
  %s2 = inlined_call_operand.vmem [shape: f32[8,1], index: 2, kind: input, shape index: {}]
  %s3 = inlined_call_operand.vmem [shape: f32[32,8], index: 3, kind: input, shape index: {}]
  %s4 = inlined_call_operand.vmem [shape: f32[32,1], index: 4, kind: input, shape index: {}]
  %s5 = inlined_call_operand.hbm [shape: f32[2,32,256], index: 5, kind: output, shape index: {}]
  %s6 = sld [smem:[#allocation0]]
  $region57: #{tpu_custom_call.1} parent=0
    _
  %s8 = ssub.s32 1, %s6
  %s9 = scalar_select 0, %s8, %s6
  $region1: #{tpu_custom_call.1} parent=0
    #allocation2 [shape = 'u8[65536]{0}', space=vmem, size = 0x10000, scoped, tag = 'input window, operand 0']
    #allocation3 [shape = 's32[2]{0}', space=sflag, size = 0x8, scoped, tag = 'scoped memory for tpu_custom_call.1']
    #allocation4 [shape = 's32[2]{0}', space=sflag, size = 0x8, scoped, tag = 'scoped memory for tpu_custom_call.1']
    #allocation5 [shape = 'u8[65536]{0}', space=vmem, size = 0x10000, scoped, tag = 'output window, operand 0']
    %10 = vsyncpa [#allocation3], 0
    %s11 = scalar_lea.sflag [#allocation3], 1
    %12 = vsyncpa %s11, 0
    %13 = vsyncpa [#allocation4], 0
    %s14 = scalar_lea.sflag [#allocation4], 1
    %15 = vsyncpa %s14, 0
    loop: start=0, step=1, limit=4
    $region2: #{tpu_custom_call.1} parent=1 // loop_pre_header
      _
    $region3: #{tpu_custom_call.1} parent=1 // loop_header
      %s17 = sphi 0, %s21
      %p18 = scmp.ge.s32.totalorder %s17, 4
      %s27 = sphi 0, %s29
      %s30 = sphi 0, %s27
      %s31 = sphi 0, %s30
      %s47 = sphi 0, %s31
      %s51 = sphi 0, %s51
      %s53 = sphi 0, %s51
      %s54 = sphi 0, %s53
      %s68 = sphi 0, %s54
      %s72 = sphi 0, %s72
      %s74 = sphi 0, %s72
      %s75 = sphi 0, %s74
      %s89 = sphi 0, %s75
      %s93 = sphi 0, %s93
      %s95 = sphi 0, %s93
      %s96 = sphi 0, %s95
      %s110 = sphi 0, %s96
      %s114 = sphi 0, %s114
      %s116 = sphi 0, %s114
      %s117 = sphi 0, %s116
      %s131 = sphi 0, %s117
      %s137 = sphi 0, %s139
      %s140 = sphi 0, %s137
      %s141 = sphi 0, %s140
      %s157 = sphi 0, %s141
    $region4: #{tpu_custom_call.1} parent=1 // loop_header_branch
      %20 = sbr.rel (%p18) target = $region8
    $region5: #{tpu_custom_call.1} parent=1 // loop_body
      %s22 = ssub.s32 %s17, 1
      %s23 = ssub.s32 %s17, 2
      %s24 = sadd.s32 %s17, 1
      %s25 = ssub.s32 %s17, %s24
      %p26 = scmp.eq.s32.totalorder %s25, 0
      %s28 = sadd.s32 %s27, 1
      %s29 = scalar_select %p26, %s27, %s28
      %p32 = pneg %p26
      %p33 = scmp.eq.s32.totalorder %s17, 1
      %p34 = por %p32, %p33
      %p35 = scmp.ne.s32.totalorder %s27, %s30
      %p36 = scmp.eq.s32.totalorder %s17, 0
      %p37 = por %p35, %p36
      %p38 = scmp.ne.s32.totalorder %s27, %s30
      %p39 = scmp.eq.s32.totalorder %s22, 1
      %p40 = por %p38, %p39
      %p41 = scmp.ne.s32.totalorder %s30, %s31
      %p42 = scmp.eq.s32.totalorder %s22, 0
      %p43 = por %p41, %p42
      %p44 = scmp.ne.s32.totalorder %s30, %s31
      %p45 = scmp.eq.s32.totalorder %s23, 1
      %p46 = por %p44, %p45
      %p48 = scmp.ne.s32.totalorder %s31, %s47
      %p49 = scmp.eq.s32.totalorder %s23, 0
      %p50 = por %p48, %p49
      %s52 = sadd.s32 %s51, 1
      %p55 = scmp.eq.s32.totalorder %s17, 1
      %p56 = scmp.ne.s32.totalorder %s51, %s53
      %p57 = scmp.eq.s32.totalorder %s17, 0
      %p58 = por %p56, %p57
      %p59 = scmp.ne.s32.totalorder %s51, %s53
      %p60 = scmp.eq.s32.totalorder %s22, 1
      %p61 = por %p59, %p60
      %p62 = scmp.ne.s32.totalorder %s53, %s54
      %p63 = scmp.eq.s32.totalorder %s22, 0
      %p64 = por %p62, %p63
      %p65 = scmp.ne.s32.totalorder %s53, %s54
      %p66 = scmp.eq.s32.totalorder %s23, 1
      %p67 = por %p65, %p66
      %p69 = scmp.ne.s32.totalorder %s54, %s68
      %p70 = scmp.eq.s32.totalorder %s23, 0
      %p71 = por %p69, %p70
      %s73 = sadd.s32 %s72, 1
      %p76 = scmp.eq.s32.totalorder %s17, 1
      %p77 = scmp.ne.s32.totalorder %s72, %s74
      %p78 = scmp.eq.s32.totalorder %s17, 0
      %p79 = por %p77, %p78
      %p80 = scmp.ne.s32.totalorder %s72, %s74
      %p81 = scmp.eq.s32.totalorder %s22, 1
      %p82 = por %p80, %p81
      %p83 = scmp.ne.s32.totalorder %s74, %s75
      %p84 = scmp.eq.s32.totalorder %s22, 0
      %p85 = por %p83, %p84
      %p86 = scmp.ne.s32.totalorder %s74, %s75
      %p87 = scmp.eq.s32.totalorder %s23, 1
      %p88 = por %p86, %p87
      %p90 = scmp.ne.s32.totalorder %s75, %s89
      %p91 = scmp.eq.s32.totalorder %s23, 0
      %p92 = por %p90, %p91
      %s94 = sadd.s32 %s93, 1
      %p97 = scmp.eq.s32.totalorder %s17, 1
      %p98 = scmp.ne.s32.totalorder %s93, %s95
      %p99 = scmp.eq.s32.totalorder %s17, 0
      %p100 = por %p98, %p99
      %p101 = scmp.ne.s32.totalorder %s93, %s95
      %p102 = scmp.eq.s32.totalorder %s22, 1
      %p103 = por %p101, %p102
      %p104 = scmp.ne.s32.totalorder %s95, %s96
      %p105 = scmp.eq.s32.totalorder %s22, 0
      %p106 = por %p104, %p105
      %p107 = scmp.ne.s32.totalorder %s95, %s96
      %p108 = scmp.eq.s32.totalorder %s23, 1
      %p109 = por %p107, %p108
      %p111 = scmp.ne.s32.totalorder %s96, %s110
      %p112 = scmp.eq.s32.totalorder %s23, 0
      %p113 = por %p111, %p112
      %s115 = sadd.s32 %s114, 1
      %p118 = scmp.eq.s32.totalorder %s17, 1
      %p119 = scmp.ne.s32.totalorder %s114, %s116
      %p120 = scmp.eq.s32.totalorder %s17, 0
      %p121 = por %p119, %p120
      %p122 = scmp.ne.s32.totalorder %s114, %s116
      %p123 = scmp.eq.s32.totalorder %s22, 1
      %p124 = por %p122, %p123
      %p125 = scmp.ne.s32.totalorder %s116, %s117
      %p126 = scmp.eq.s32.totalorder %s22, 0
      %p127 = por %p125, %p126
      %p128 = scmp.ne.s32.totalorder %s116, %s117
      %p129 = scmp.eq.s32.totalorder %s23, 1
      %p130 = por %p128, %p129
      %p132 = scmp.ne.s32.totalorder %s117, %s131
      %p133 = scmp.eq.s32.totalorder %s23, 0
      %p134 = por %p132, %p133
      %s135 = ssub.s32 %s17, %s24
      %p136 = scmp.eq.s32.totalorder %s135, 0
      %s138 = sadd.s32 %s137, 1
      %s139 = scalar_select %p136, %s137, %s138
      %p142 = pneg %p136
      %p143 = scmp.eq.s32.totalorder %s17, 1
      %p144 = por %p142, %p143
      %p145 = scmp.ne.s32.totalorder %s137, %s140
      %p146 = scmp.eq.s32.totalorder %s17, 0
      %p147 = por %p145, %p146
      %p148 = scmp.ne.s32.totalorder %s137, %s140
      %p149 = scmp.eq.s32.totalorder %s22, 1
      %p150 = por %p148, %p149
      %p151 = scmp.ne.s32.totalorder %s140, %s141
      %p152 = scmp.eq.s32.totalorder %s22, 0
      %p153 = por %p151, %p152
      %p154 = scmp.ne.s32.totalorder %s140, %s141
      %p155 = scmp.eq.s32.totalorder %s23, 1
      %p156 = por %p154, %p155
      %p158 = scmp.ne.s32.totalorder %s141, %s157
      %p159 = scmp.eq.s32.totalorder %s23, 0
      %p160 = por %p158, %p159
      %p161 = scmp.le.s32.totalorder 1, %s17
      %p162 = scmp.lt.s32.totalorder %s17, 3
      %p163 = pnand %p161, %p162
      %p164 = pneg %p163
      // Predicated region
      $region9: #{tpu_custom_call.1} parent=5 // pred_check
        _
      $region10: #{tpu_custom_call.1} parent=5 // pred_check_branch
        %166 = sbr.rel (%p163) target = $region12
      $region11: #{tpu_custom_call.1} parent=5 // pred_region
        %s167 = ssub.s32 %s17, 1
        // Predicated region
        $region13: #{tpu_custom_call.1} parent=11 // pred_check
          %p168 = pneg %p64
        $region14: #{tpu_custom_call.1} parent=11 // pred_check_branch
          %170 = sbr.rel (%p168) target = $region16
        $region15: #{tpu_custom_call.1} parent=11 // pred_region
          _
        $region16: #{tpu_custom_call.1} parent=11 // pred_fallthru
          _
        // Predicated region
        $region17: #{tpu_custom_call.1} parent=11 // pred_check
          %p171 = pneg %p85
        $region18: #{tpu_custom_call.1} parent=11 // pred_check_branch
          %173 = sbr.rel (%p171) target = $region20
        $region19: #{tpu_custom_call.1} parent=11 // pred_region
          _
        $region20: #{tpu_custom_call.1} parent=11 // pred_fallthru
          _
        // Predicated region
        $region21: #{tpu_custom_call.1} parent=11 // pred_check
          %p174 = pneg %p106
        $region22: #{tpu_custom_call.1} parent=11 // pred_check_branch
          %176 = sbr.rel (%p174) target = $region24
        $region23: #{tpu_custom_call.1} parent=11 // pred_region
          _
        $region24: #{tpu_custom_call.1} parent=11 // pred_fallthru
          _
        // Predicated region
        $region25: #{tpu_custom_call.1} parent=11 // pred_check
          %p177 = pneg %p127
        $region26: #{tpu_custom_call.1} parent=11 // pred_check_branch
          %179 = sbr.rel (%p177) target = $region28
        $region27: #{tpu_custom_call.1} parent=11 // pred_region
          _
        $region28: #{tpu_custom_call.1} parent=11 // pred_fallthru
          _
      $region12: #{tpu_custom_call.1} parent=5 // pred_fallthru
        _
      %p180 = scmp.lt.s32.totalorder %s17, 2
      // Predicated region
      $region29: #{tpu_custom_call.1} parent=5 // pred_check
        %p181 = pneg %p180
      $region30: #{tpu_custom_call.1} parent=5 // pred_check_branch
        %183 = sbr.rel (%p181) target = $region32
      $region31: #{tpu_custom_call.1} parent=5 // pred_region
        // Predicated region
        $region33: #{tpu_custom_call.1} parent=31 // pred_check
          %p184 = pneg %p37
        $region34: #{tpu_custom_call.1} parent=31 // pred_check_branch
          %186 = sbr.rel (%p184) target = $region36
        $region35: #{tpu_custom_call.1} parent=31 // pred_region
          %s187 = sand.u32 %s27, 1
          %s188 = scalar_lea.sflag [#allocation3], %s187
          %s189 = sand.u32 %s27, 1
          %s190 = smul.addr %s189, 64
          %s191 = scalar_lea.vmem [#allocation2], %s190
          %s193 = ssub.s32 1024, 1024
          %194 = vsyncadd %s188, %s193
          %s195 = smul.addr %s17, 8
          %s196 = smul.addr %s195, 128
          %s197 = scalar_lea.hbm %s0, %s196
          %s198 = sshll.u32 %s191, 4
          %s199 = int_to_ptr.vmem [resolvable:$true] %s198
          %204 = dma.hbm_to_vmem [thread:$0]  %s197, 1024, %s199, %s188, 256, 256, 16
        $region36: #{tpu_custom_call.1} parent=31 // pred_fallthru
          _
      $region32: #{tpu_custom_call.1} parent=5 // pred_fallthru
        _
      %p205 = scmp.le.s32.totalorder 1, %s17
      %p206 = scmp.lt.s32.totalorder %s17, 3
      %p207 = pnand %p205, %p206
      %p208 = pneg %p207
      // Predicated region
      $region37: #{tpu_custom_call.1} parent=5 // pred_check
        _
      $region38: #{tpu_custom_call.1} parent=5 // pred_check_branch
        %210 = sbr.rel (%p207) target = $region40
      $region39: #{tpu_custom_call.1} parent=5 // pred_region
        %s211 = ssub.s32 %s17, 1
        %s212 = sand.u32 %s30, 1
        %s213 = scalar_lea.sflag [#allocation3], %s212
        %s214 = sand.u32 %s30, 1
        %s215 = smul.addr %s214, 64
        %s216 = scalar_lea.vmem [#allocation2], %s215
        // Predicated region
        $region41: #{tpu_custom_call.1} parent=39 // pred_check
          %p217 = pneg %p43
        $region42: #{tpu_custom_call.1} parent=39 // pred_check_branch
          %219 = sbr.rel (%p217) target = $region44
        $region43: #{tpu_custom_call.1} parent=39 // pred_region
          %220 = dma.done %s213, 1024
        $region44: #{tpu_custom_call.1} parent=39 // pred_fallthru
          _
        %s221 = sand.u32 %s30, 1
        %s222 = scalar_lea.sflag [#allocation3], %s221
        %s223 = sand.u32 %s30, 1
        %s224 = smul.addr %s223, 64
        %s225 = scalar_lea.vmem [#allocation2], %s224
        %p226 = pneg %p43
        %p227 = pneg %p40
        %p228 = pneg %p64
        %p229 = pneg %p61
        %p230 = pneg %p85
        %p231 = pneg %p82
        %p232 = pneg %p106
        %p233 = pneg %p103
        %p234 = pneg %p127
        %p235 = pneg %p124
        %p236 = pneg %p153
        %p237 = pneg %p150
        %s238 = sand.u32 %s140, 1
        %s239 = scalar_lea.sflag [#allocation4], %s238
        %s240 = sand.u32 %s140, 1
        %s241 = smul.addr %s240, 64
        %s242 = scalar_lea.vmem [#allocation5], %s241
        %v243 = vld [vmem:[%s216] sm:$0xff]
        %v244 = vld [vmem:[%s216 + $0x8] sm:$0xff]
        %v245 = vld [vmem:[%s216 + $0x10] sm:$0xff]
        %v246 = vld [vmem:[%s216 + $0x18] sm:$0xff]
        %v247 = vld [vmem:[%s216 + $0x20] sm:$0xff]
        %v248 = vld [vmem:[%s216 + $0x28] sm:$0xff]
        %v249 = vld [vmem:[%s216 + $0x30] sm:$0xff]
        %v250 = vld [vmem:[%s216 + $0x38] sm:$0xff]
        %v251 = vadd.f32 %v243, %v244
        %252 = vadd.xlane.f32.xlu0 %v251
        %v253 = vpop.xlane.xlu0 %252
        %v254 = vadd.f32 %v245, %v246
        %255 = vadd.xlane.f32.xlu0 %v254
        %v256 = vpop.xlane.xlu0 %255
        %v257 = vadd.f32 %v247, %v248
        %258 = vadd.xlane.f32.xlu0 %v257
        %v259 = vpop.xlane.xlu0 %258
        %v260 = vadd.f32 %v249, %v250
        %261 = vadd.xlane.f32.xlu0 %v260
        %v262 = vpop.xlane.xlu0 %261
        %v263 = vmul.f32 %v253, 0.00390625
        %v264 = vmul.f32 %v256, 0.00390625
        %v265 = vmul.f32 %v259, 0.00390625
        %v266 = vmul.f32 %v262, 0.00390625
        %v267 = vld [vmem:[%s1] sm:$0xff]
        %v268 = vld [vmem:[%s2] sm:$0xff]
        %vm269 = vcmask 261120
        %v271 = vsel %vm269, %v267, 0
        %273 = vmatprep.subr.mxu0 0.0
        %274 = vmatpush1.msra.mxu0 %v263
        %275 = vmatprep.subr.mxu0 0.0
        %276 = vmatpush1.msra.mxu0 %v264
        %277 = vmatprep.subr.mxu0 0.0
        %278 = vmatpush1.msra.mxu0 %v265
        %279 = vmatprep.subr.mxu0 0.0
        %280 = vmatpush1.msra.mxu0 %v266
        %281 = vmatprep.subr.mxu0 0.0
        %282 = vmatpush1.msra.mxu0 0.0
        %283 = vmatprep.subr.mxu0 0.0
        %284 = vmatpush1.msra.mxu0 0.0
        %285 = vmatprep.subr.mxu0 0.0
        %286 = vmatpush1.msra.mxu0 0.0
        %287 = vmatprep.subr.mxu0 0.0
        %288 = vmatpush1.msra.mxu0 0.0
        %289 = vmatprep.subr.mxu0 0.0
        %290 = vmatpush1.msra.mxu0 0.0
        %291 = vmatprep.subr.mxu0 0.0
        %292 = vmatpush1.msra.mxu0 0.0
        %293 = vmatprep.subr.mxu0 0.0
        %294 = vmatpush1.msra.mxu0 0.0
        %295 = vmatprep.subr.mxu0 0.0
        %296 = vmatpush1.msra.mxu0 0.0
        %297 = vmatprep.subr.mxu0 0.0
        %298 = vmatpush1.msra.mxu0 0.0
        %299 = vmatprep.subr.mxu0 0.0
        %300 = vmatpush1.msra.mxu0 0.0
        %301 = vmatprep.subr.mxu0 0.0
        %302 = vmatpush1.msra.mxu0 0.0
        %303 = vmatprep.subr.mxu0 0.0
        %304 = vmatpush1.msra.mxu0 0.0
        %305 = vmatprep.subr.mxu0 0.0
        %306 = vmatpush1.msra.mxu0 0.0
        %307 = vmatprep.subr.mxu0 0.0
        %308 = vmatpush1.msra.mxu0 0.0
        %309 = vmatprep.subr.mxu0 0.0
        %310 = vmatpush1.msra.mxu0 0.0
        %311 = vmatprep.subr.mxu0 0.0
        %312 = vmatpush1.msra.mxu0 0.0
        %313 = vmatprep.subr.mxu0 0.0
        %314 = vmatpush1.msra.mxu0 0.0
        %315 = vmatprep.subr.mxu0 0.0
        %316 = vmatpush1.msra.mxu0 0.0
        %317 = vmatprep.subr.mxu0 0.0
        %318 = vmatpush1.msra.mxu0 0.0
        %319 = vmatprep.subr.mxu0 0.0
        %320 = vmatpush1.msra.mxu0 0.0
        %321 = vmatprep.subr.mxu0 0.0
        %322 = vmatpush1.msra.mxu0 0.0
        %323 = vmatprep.subr.mxu0 0.0
        %324 = vmatpush1.msra.mxu0 0.0
        %325 = vmatprep.subr.mxu0 0.0
        %326 = vmatpush1.msra.mxu0 0.0
        %327 = vmatprep.subr.mxu0 0.0
        %328 = vmatpush1.msra.mxu0 0.0
        %329 = vmatprep.subr.mxu0 0.0
        %330 = vmatpush1.msra.mxu0 0.0
        %331 = vmatprep.subr.mxu0 0.0
        %332 = vmatpush1.msra.mxu0 0.0
        %333 = vmatprep.subr.mxu0 0.0
        %334 = vmatpush1.msra.mxu0 0.0
        %335 = vmatprep.subr.mxu0 0.0
        %336 = vmatpush1.msra.mxu0 0.0
        %337 = vmatprep.mubr.f32.mxu0 0.0
        %338 = vmatmul.mubr.f32.gmra.mrb[0].mxu0 %v271
        %v339 = vpop.f32.mrb[0].mxu0
        %v340 = vadd.f32 %v268, %v339
        %v341 = vpop.f32.mrb[0].mxu0
        %342 = vdwg.mxu0
        %v343 = vmax.f32 %v340, 0.0
        %v344 = vld [vmem:[%s3] sm:$0xff]
        %v345 = vld [vmem:[%s3 + $0x8] sm:$0xff]
        %v346 = vld [vmem:[%s3 + $0x10] sm:$0xff]
        %v347 = vld [vmem:[%s3 + $0x18] sm:$0xff]
        %v348 = vld [vmem:[%s4] sm:$0xff]
        %v349 = vld [vmem:[%s4 + $0x8] sm:$0xff]
        %v350 = vld [vmem:[%s4 + $0x10] sm:$0xff]
        %v351 = vld [vmem:[%s4 + $0x18] sm:$0xff]
        %vm352 = vcmask 64512
        %v354 = vsel %vm352, %v344, 0
        %v357 = vsel %vm352, %v345, 0
        %v360 = vsel %vm352, %v346, 0
        %v363 = vsel %vm352, %v347, 0
        %365 = vmatprep.subr.mxu0 0.0
        %366 = vmatpush1.msra.mxu0 %v343
        %367 = vmatprep.subr.mxu0 0.0
        %368 = vmatpush1.msra.mxu0 0.0
        %369 = vmatprep.subr.mxu0 0.0
        %370 = vmatpush1.msra.mxu0 0.0
        %371 = vmatprep.subr.mxu0 0.0
        %372 = vmatpush1.msra.mxu0 0.0
        %373 = vmatprep.subr.mxu0 0.0
        %374 = vmatpush1.msra.mxu0 0.0
        %375 = vmatprep.subr.mxu0 0.0
        %376 = vmatpush1.msra.mxu0 0.0
        %377 = vmatprep.subr.mxu0 0.0
        %378 = vmatpush1.msra.mxu0 0.0
        %379 = vmatprep.subr.mxu0 0.0
        %380 = vmatpush1.msra.mxu0 0.0
        %381 = vmatprep.subr.mxu0 0.0
        %382 = vmatpush1.msra.mxu0 0.0
        %383 = vmatprep.subr.mxu0 0.0
        %384 = vmatpush1.msra.mxu0 0.0
        %385 = vmatprep.subr.mxu0 0.0
        %386 = vmatpush1.msra.mxu0 0.0
        %387 = vmatprep.subr.mxu0 0.0
        %388 = vmatpush1.msra.mxu0 0.0
        %389 = vmatprep.subr.mxu0 0.0
        %390 = vmatpush1.msra.mxu0 0.0
        %391 = vmatprep.subr.mxu0 0.0
        %392 = vmatpush1.msra.mxu0 0.0
        %393 = vmatprep.subr.mxu0 0.0
        %394 = vmatpush1.msra.mxu0 0.0
        %395 = vmatprep.subr.mxu0 0.0
        %396 = vmatpush1.msra.mxu0 0.0
        %397 = vmatprep.subr.mxu0 0.0
        %398 = vmatpush1.msra.mxu0 0.0
        %399 = vmatprep.subr.mxu0 0.0
        %400 = vmatpush1.msra.mxu0 0.0
        %401 = vmatprep.subr.mxu0 0.0
        %402 = vmatpush1.msra.mxu0 0.0
        %403 = vmatprep.subr.mxu0 0.0
        %404 = vmatpush1.msra.mxu0 0.0
        %405 = vmatprep.subr.mxu0 0.0
        %406 = vmatpush1.msra.mxu0 0.0
        %407 = vmatprep.subr.mxu0 0.0
        %408 = vmatpush1.msra.mxu0 0.0
        %409 = vmatprep.subr.mxu0 0.0
        %410 = vmatpush1.msra.mxu0 0.0
        %411 = vmatprep.subr.mxu0 0.0
        %412 = vmatpush1.msra.mxu0 0.0
        %413 = vmatprep.subr.mxu0 0.0
        %414 = vmatpush1.msra.mxu0 0.0
        %415 = vmatprep.subr.mxu0 0.0
        %416 = vmatpush1.msra.mxu0 0.0
        %417 = vmatprep.subr.mxu0 0.0
        %418 = vmatpush1.msra.mxu0 0.0
        %419 = vmatprep.subr.mxu0 0.0
        %420 = vmatpush1.msra.mxu0 0.0
        %421 = vmatprep.subr.mxu0 0.0
        %422 = vmatpush1.msra.mxu0 0.0
        %423 = vmatprep.subr.mxu0 0.0
        %424 = vmatpush1.msra.mxu0 0.0
        %425 = vmatprep.subr.mxu0 0.0
        %426 = vmatpush1.msra.mxu0 0.0
        %427 = vmatprep.subr.mxu0 0.0
        %428 = vmatpush1.msra.mxu0 0.0
        %429 = vmatprep.mubr.f32.mxu0 0.0
        %430 = vmatmul.mubr.f32.gmra.mrb[0].mxu0 %v354
        %v431 = vpop.f32.mrb[0].mxu0
        %v432 = vadd.f32 %v348, %v431
        %v433 = vpop.f32.mrb[0].mxu0
        %434 = vmatprep.mubr.f32.mxu0 0.0
        %435 = vmatmul.mubr.f32.gmra.mrb[0].mxu0 %v357
        %v436 = vpop.f32.mrb[0].mxu0
        %v437 = vadd.f32 %v349, %v436
        %v438 = vpop.f32.mrb[0].mxu0
        %439 = vmatprep.mubr.f32.mxu0 0.0
        %440 = vmatmul.mubr.f32.gmra.mrb[0].mxu0 %v360
        %v441 = vpop.f32.mrb[0].mxu0
        %v442 = vadd.f32 %v350, %v441
        %v443 = vpop.f32.mrb[0].mxu0
        %444 = vmatprep.mubr.f32.mxu0 0.0
        %445 = vmatmul.mubr.f32.gmra.mrb[0].mxu0 %v363
        %v446 = vpop.f32.mrb[0].mxu0
        %v447 = vadd.f32 %v351, %v446
        %v448 = vpop.f32.mrb[0].mxu0
        %449 = vdwg.mxu0
        %v450 = vmul.f32 %v432, 0.16666667
        %v451 = vmul.f32 %v437, 0.16666667
        %v452 = vmul.f32 %v442, 0.16666667
        %v453 = vmul.f32 %v447, 0.16666667
        %v454 = vadd.f32 %v450, 0.5
        %v455 = vadd.f32 %v451, 0.5
        %v456 = vadd.f32 %v452, 0.5
        %v457 = vadd.f32 %v453, 0.5
        %v458 = vmax.f32 %v454, 0.0
        %v459 = vmax.f32 %v455, 0.0
        %v460 = vmax.f32 %v456, 0.0
        %v461 = vmax.f32 %v457, 0.0
        %v462 = vmin.f32 %v458, 1.0
        %v463 = vmin.f32 %v459, 1.0
        %v464 = vmin.f32 %v460, 1.0
        %v465 = vmin.f32 %v461, 1.0
        %467 = vset.pattern.permute.xlu0 0
        %468 = vperm.xlu0 %467, %v462
        %v469 = vpop.permute.xlu0 %468
        %472 = vset.pattern.permute.xlu0 0
        %473 = vperm.xlu0 %472, %v463
        %v474 = vpop.permute.xlu0 %473
        %477 = vset.pattern.permute.xlu0 0
        %478 = vperm.xlu0 %477, %v464
        %v479 = vpop.permute.xlu0 %478
        %482 = vset.pattern.permute.xlu0 0
        %483 = vperm.xlu0 %482, %v465
        %v484 = vpop.permute.xlu0 %483
        %v486 = vmul.f32 %v243, %v469
        %v487 = vmul.f32 %v244, %v469
        %v488 = vmul.f32 %v245, %v474
        %v489 = vmul.f32 %v246, %v474
        %v490 = vmul.f32 %v247, %v479
        %v491 = vmul.f32 %v248, %v479
        %v492 = vmul.f32 %v249, %v484
        %v493 = vmul.f32 %v250, %v484
        %494 = vst [vmem:[%s242] sm:$0xff] %v486
        %495 = vst [vmem:[%s242 + $0x8] sm:$0xff] %v487
        %496 = vst [vmem:[%s242 + $0x10] sm:$0xff] %v488
        %497 = vst [vmem:[%s242 + $0x18] sm:$0xff] %v489
        %498 = vst [vmem:[%s242 + $0x20] sm:$0xff] %v490
        %499 = vst [vmem:[%s242 + $0x28] sm:$0xff] %v491
        %500 = vst [vmem:[%s242 + $0x30] sm:$0xff] %v492
        %501 = vst [vmem:[%s242 + $0x38] sm:$0xff] %v493
        %s502 = sand.u32 %s140, 1
        %s503 = scalar_lea.sflag [#allocation4], %s502
        %s504 = sand.u32 %s140, 1
        %s505 = smul.addr %s504, 64
        %s506 = scalar_lea.vmem [#allocation5], %s505
        // Predicated region
        $region45: #{tpu_custom_call.1} parent=39 // pred_check
          %p507 = pneg %p150
        $region46: #{tpu_custom_call.1} parent=39 // pred_check_branch
          %509 = sbr.rel (%p507) target = $region48
        $region47: #{tpu_custom_call.1} parent=39 // pred_region
          %s511 = ssub.s32 1024, 1024
          %512 = vsyncadd %s503, %s511
          %s513 = smul.addr %s22, 8
          %s514 = smul.addr %s513, 128
          %s515 = scalar_lea.hbm %s5, %s514
          %s516 = sshll.u32 %s506, 4
          %s517 = int_to_ptr.vmem [resolvable:$true] %s516
          %522 = dma.vmem_to_hbm [thread:$0]  %s517, 1024, %s515, %s503, 256, 256, 16
        $region48: #{tpu_custom_call.1} parent=39 // pred_fallthru
          _
      $region40: #{tpu_custom_call.1} parent=5 // pred_fallthru
        _
      %p523 = scmp.le.s32.totalorder 2, %s17
      // Predicated region
      $region49: #{tpu_custom_call.1} parent=5 // pred_check
        %p524 = pneg %p523
      $region50: #{tpu_custom_call.1} parent=5 // pred_check_branch
        %526 = sbr.rel (%p524) target = $region52
      $region51: #{tpu_custom_call.1} parent=5 // pred_region
        %s527 = ssub.s32 %s17, 2
        // Predicated region
        $region53: #{tpu_custom_call.1} parent=51 // pred_check
          %p528 = pneg %p156
        $region54: #{tpu_custom_call.1} parent=51 // pred_check_branch
          %530 = sbr.rel (%p528) target = $region56
        $region55: #{tpu_custom_call.1} parent=51 // pred_region
          %s531 = sand.u32 %s141, 1
          %s532 = scalar_lea.sflag [#allocation4], %s531
          %s533 = sand.u32 %s141, 1
          %s534 = smul.addr %s533, 64
          %s535 = scalar_lea.vmem [#allocation5], %s534
          %536 = dma.done %s532, 1024
        $region56: #{tpu_custom_call.1} parent=51 // pred_fallthru
          _
      $region52: #{tpu_custom_call.1} parent=5 // pred_fallthru
        _
    $region6: #{tpu_custom_call.1} parent=1 // loop_footer
      %s21 = sadd.s32 1, %s17
    $region7: #{tpu_custom_call.1} parent=1 // loop_footer_branch
      %16 = sbr.rel target = $region3
    $region8: #{tpu_custom_call.1} parent=1 // loop_exit
      _
    %537 = vsyncpa [#allocation3], 1
    %s538 = scalar_lea.sflag [#allocation3], 1
    %539 = vsyncpa %s538, 1
    %540 = vsyncpa [#allocation4], 1
    %s541 = scalar_lea.sflag [#allocation4], 1
    %542 = vsyncpa %s541, 1

</llo_original>
